<compile_context>
chip_gen: v7x
topology: tpu7x:2x2x1
jax: 0.10.0
libtpu: 0.0.40
codegen_flags: <defaults>
</compile_context>

<pallas_src>
import functools

import jax
import jax.numpy as jnp
from jax import lax
from jax.experimental import pallas as pl
from jax.experimental.pallas import tpu as pltpu

_INV_SQRT2 = 0.7071067811865476
_SQRT_2_OVER_PI = 0.7978845608028654
_LN_EPS = 1e-5
_NEG_PAD = -1e30          # bias of padded logit columns -> exp() underflows to 0
_LANE = 128               # lane-dense logits width


def _round_up(a, b):
    return -(-a // b) * b


def _head_kernel(x1_ref, x2_ref, lab_ref, w1a_ref, w1b_ref, b1_ref, g_ref,
                 beta_ref, w2_ref, b2_ref, logits_ref, nll_ref, acc_ref,
                 *, approximate_gelu):
    # ---- Linear(2H, 2H): concat eliminated; the two K-halves accumulate ----
    acc_ref[...] = jnp.dot(x1_ref[...], w1a_ref[...],
                           preferred_element_type=jnp.float32)
    acc_ref[...] += jnp.dot(x2_ref[...], w1b_ref[...],
                            preferred_element_type=jnp.float32)
    h = acc_ref[...] + b1_ref[...]

    # ---- LayerNorm(2H), eps=1e-5 — single-pass stats (var = E[h^2] - mu^2) ----
    mu = jnp.mean(h, axis=-1, keepdims=True)
    ms = jnp.mean(h * h, axis=-1, keepdims=True)
    var = ms - mu * mu
    hn = (h - mu) * lax.rsqrt(var + _LN_EPS)
    hn = hn * g_ref[...] + beta_ref[...]

    # ---- GELU (exact erf by default: matches torch.nn.GELU) ----
    if approximate_gelu:
        inner = _SQRT_2_OVER_PI * (hn + 0.044715 * hn * hn * hn)
        ge = 0.5 * hn * (1.0 + jnp.tanh(inner))          # EUP path
    else:
        ge = 0.5 * hn * (1.0 + lax.erf(hn * _INV_SQRT2))

    # ---- Linear(2H, 128) lane-dense; both matmul operands in matmul dtype ----
    logits = jnp.dot(ge.astype(w2_ref.dtype), w2_ref[...],
                     preferred_element_type=jnp.float32) + b2_ref[...]
    logits_ref[...] = logits

    # ---- per-row cross-entropy NLL; labels gathered via iota compare ----
    m = jnp.max(logits, axis=-1, keepdims=True)
    lse = m + jnp.log(jnp.sum(jnp.exp(logits - m), axis=-1, keepdims=True))
    lab = lab_ref[...]                                          # (tb, 1) int32
    col = lax.broadcasted_iota(jnp.int32, logits.shape, 1)      # lane index
    picked = jnp.sum(jnp.where(col == lab, logits, 0.0), axis=-1, keepdims=True)
    nll_ref[...] = lse - picked


def _const_spec(shape):
    """BlockSpec for a grid-resident (constant-index) operand, single-buffered."""
    if hasattr(pl, "Buffered"):
        try:
            return pl.BlockSpec(shape, lambda i: (0, 0),
                                pipeline_mode=pl.Buffered(1))
        except TypeError:
            pass
    return pl.BlockSpec(shape, lambda i: (0, 0))


def _tile_spec(shape):
    return pl.BlockSpec(shape, lambda i: (i, 0))


@functools.partial(jax.jit,
                   static_argnames=("tb", "matmul_dtype", "approximate_gelu"))
def nlvr2_head(x1, x2, w1, b1, gamma, beta, w2, b2, labels,
               *, tb=256, matmul_dtype=jnp.bfloat16, approximate_gelu=False):
    """Returns (loss, logits) — same as ModelWrapper.forward with labels."""
    B, H = x1.shape
    H2 = w1.shape[0]                 # 2 * hidden_size
    L = w2.shape[1]                  # num_labels
    LP = _round_up(max(L, _LANE), _LANE)

    # Batch tile: 16-row aligned for sub-32-bit matmul dtypes (bf16 packs 16
    # rows per sublane group), 8-row aligned for f32. Prefer a tile that
    # divides B exactly so no wrapper-side activation padding is needed.
    itemsize = jnp.dtype(matmul_dtype).itemsize
    align = max(8, 32 // itemsize)
    tb_eff = max(align, (min(int(tb), _round_up(B, align)) // align) * align)
    if B % tb_eff != 0:
        for cand in range(tb_eff, align - 1, -align):
            if B % cand == 0:
                tb_eff = cand
                break
    B_pad = _round_up(B, tb_eff)
    grid = (B_pad // tb_eff,)        # "parallel" -> splits across TCs on v7x

    # ---- wrapper-side layout plumbing (cheap XLA ops) ----
    w1a = w1[:H].astype(matmul_dtype)            # (H, 2H)
    w1b = w1[H:].astype(matmul_dtype)            # (H, 2H)
    x1p = x1.astype(matmul_dtype)
    x2p = x2.astype(matmul_dtype)
    b1r = b1.reshape(1, H2).astype(jnp.float32)
    g_r = gamma.reshape(1, H2).astype(jnp.float32)
    be_r = beta.reshape(1, H2).astype(jnp.float32)

    w2p = jnp.pad(w2.astype(jnp.float32), ((0, 0), (0, LP - L)))  # zero pad cols
    w2p = w2p.astype(matmul_dtype)
    b2p = jnp.concatenate(
        [b2.reshape(1, L).astype(jnp.float32),
         jnp.full((1, LP - L), _NEG_PAD, jnp.float32)], axis=1)

    lab2d = labels.astype(jnp.int32).reshape(B, 1)

    pad_rows = B_pad - B
    if pad_rows:       # only hit when no aligned divisor of B exists
        x1p = jnp.pad(x1p, ((0, pad_rows), (0, 0)))
        x2p = jnp.pad(x2p, ((0, pad_rows), (0, 0)))
        lab2d = jnp.pad(lab2d, ((0, pad_rows), (0, 0)))

    flops = 2 * B_pad * (2 * H) * H2 + 2 * B_pad * H2 * LP
    bytes_accessed = (2 * B_pad * H * itemsize                 # activations in
                      + B_pad * 4                              # labels in
                      + (2 * H * H2 + H2 * LP) * itemsize      # weights in
                      + (3 * H2 + LP) * 4                      # biases / LN in
                      + B_pad * LP * 4 + B_pad * 4)            # logits + nll out
    cost = pl.CostEstimate(flops=flops,
                           transcendentals=B_pad * (H2 + LP),
                           bytes_accessed=bytes_accessed)

    kernel = functools.partial(_head_kernel,
                               approximate_gelu=bool(approximate_gelu))

    logits_pad, nll = pl.pallas_call(
        kernel,
        grid=grid,
        out_shape=(
            jax.ShapeDtypeStruct((B_pad, LP), jnp.float32),
            jax.ShapeDtypeStruct((B_pad, 1), jnp.float32),
        ),
        in_specs=[
            _tile_spec((tb_eff, H)),      # x1
            _tile_spec((tb_eff, H)),      # x2
            _tile_spec((tb_eff, 1)),      # labels (int32)
            _const_spec((H, H2)),         # w1_top   (single-buffered, resident)
            _const_spec((H, H2)),         # w1_bot
            _const_spec((1, H2)),         # b1
            _const_spec((1, H2)),         # gamma
            _const_spec((1, H2)),         # beta
            _const_spec((H2, LP)),        # w2 (lane-padded)
            _const_spec((1, LP)),         # b2 (lane-padded, -1e30 pad)
        ],
        out_specs=(
            _tile_spec((tb_eff, LP)),     # logits (lane-dense)
            _tile_spec((tb_eff, 1)),      # per-row NLL
        ),
        scratch_shapes=[pltpu.VMEM((tb_eff, H2), jnp.float32)],  # matmul acc
        compiler_params=pltpu.CompilerParams(
            dimension_semantics=("parallel",),
            vmem_limit_bytes=48 * 1024 * 1024,
        ),
        cost_estimate=cost,
    )(x1p, x2p, lab2d, w1a, w1b, b1r, g_r, be_r, w2p, b2p)

    logits = logits_pad[:B, :L]
    loss = jnp.mean(nll[:B, 0])      # mean over the true batch size
    return loss, logits


def _reference(x1, x2, w1, b1, gamma, beta, w2, b2, labels):
    """Pure-JAX f32 reference of the same head (matches the torch module)."""
    x = jnp.concatenate([x1, x2], axis=-1).astype(jnp.float32)
    h = x @ w1 + b1
    mu = jnp.mean(h, axis=-1, keepdims=True)
    var = jnp.mean((h - mu) ** 2, axis=-1, keepdims=True)
    hn = (h - mu) / jnp.sqrt(var + _LN_EPS) * gamma + beta
    ge = jax.nn.gelu(hn, approximate=False)
    logits = ge @ w2 + b2
    lse = jax.nn.logsumexp(logits, axis=-1)
    nll = lse - jnp.take_along_axis(logits, labels[:, None], axis=-1)[:, 0]
    return jnp.mean(nll), logits


if __name__ == "__main__":
    # Small synthetic shapes: batch=16, hidden=32 (stand-in for the backbone's
    # 768), num_labels=2 (NLVR2).
    B, H, NUM_LABELS = 16, 32, 2
    H2 = 2 * H

    key = jax.random.PRNGKey(0)
    ks = jax.random.split(key, 7)

    # Stand-in pooled features (what the backbone's pooler_output would give).
    x1 = jax.random.normal(ks[0], (B, H), jnp.float32)
    x2 = jax.random.normal(ks[1], (B, H), jnp.float32)

    # Deterministic classifier parameters.
    w1 = jax.random.normal(ks[2], (H2, H2), jnp.float32) * 0.05
    b1 = jax.random.normal(ks[3], (H2,), jnp.float32) * 0.01
    gamma = jnp.ones((H2,), jnp.float32)
    beta = jnp.zeros((H2,), jnp.float32)
    w2 = jax.random.normal(ks[4], (H2, NUM_LABELS), jnp.float32) * 0.05
    b2 = jax.random.normal(ks[5], (NUM_LABELS,), jnp.float32) * 0.01
    labels = jax.random.randint(ks[6], (B,), 0, NUM_LABELS)

    ref_loss, ref_logits = _reference(x1, x2, w1, b1, gamma, beta, w2, b2, labels)

    # Default path: bf16 matmul inputs on both matmuls (f32 accumulation).
    loss_bf, logits_bf = nlvr2_head(x1, x2, w1, b1, gamma, beta, w2, b2, labels)
    jax.block_until_ready((loss_bf, logits_bf))
    assert logits_bf.shape == (B, NUM_LABELS)
    assert jnp.allclose(logits_bf, ref_logits, atol=5e-2, rtol=5e-2)
    assert jnp.allclose(loss_bf, ref_loss, atol=5e-2, rtol=5e-2)

    # f32 matmul path (tb=8 -> grid of 2 tiles exercises the pipeline): tight check.
    loss, logits = nlvr2_head(x1, x2, w1, b1, gamma, beta, w2, b2, labels,
                              tb=8, matmul_dtype=jnp.float32)
    jax.block_until_ready((loss, logits))
    assert jnp.allclose(logits, ref_logits, atol=1e-4, rtol=1e-4)
    assert jnp.allclose(loss, ref_loss, atol=1e-4, rtol=1e-4)

    print("KERNEL_OK")
</pallas_src>

<mosaic_0001>
module attributes {stable_mosaic.version = 11 : i64} {
  func.func @_head_kernel(%arg0: i32, %arg1: memref<16x32xbf16, #tpu.memory_space<vmem>>, %arg2: memref<16x32xbf16, #tpu.memory_space<vmem>>, %arg3: memref<16x1xi32, #tpu.memory_space<vmem>>, %arg4: memref<32x64xbf16, #tpu.memory_space<vmem>>, %arg5: memref<32x64xbf16, #tpu.memory_space<vmem>>, %arg6: memref<1x64xf32, #tpu.memory_space<vmem>>, %arg7: memref<1x64xf32, #tpu.memory_space<vmem>>, %arg8: memref<1x64xf32, #tpu.memory_space<vmem>>, %arg9: memref<64x128xbf16, #tpu.memory_space<vmem>>, %arg10: memref<1x128xf32, #tpu.memory_space<vmem>>, %arg11: memref<16x128xf32, #tpu.memory_space<vmem>>, %arg12: memref<16x1xf32, #tpu.memory_space<vmem>>, %arg13: memref<16x64xf32, #tpu.memory_space<vmem>>) attributes {dimension_semantics = [#tpu.dimension_semantics<parallel>], iteration_bounds = array<i64: 1>, scalar_prefetch = 0 : i64, scratch_operands = 1 : i64, tpu.core_type = #tpu.core_type<tc>, window_params = [{transform_indices = @transform_0, window_bounds = array<i64: 16, 32>}, {transform_indices = @transform_1, window_bounds = array<i64: 16, 32>}, {transform_indices = @transform_2, window_bounds = array<i64: 16, 1>}, {pipeline_mode = #tpu.pipeline_mode<synchronous>, transform_indices = @transform_3, window_bounds = array<i64: 32, 64>}, {pipeline_mode = #tpu.pipeline_mode<synchronous>, transform_indices = @transform_4, window_bounds = array<i64: 32, 64>}, {pipeline_mode = #tpu.pipeline_mode<synchronous>, transform_indices = @transform_5, window_bounds = array<i64: 1, 64>}, {pipeline_mode = #tpu.pipeline_mode<synchronous>, transform_indices = @transform_6, window_bounds = array<i64: 1, 64>}, {pipeline_mode = #tpu.pipeline_mode<synchronous>, transform_indices = @transform_7, window_bounds = array<i64: 1, 64>}, {pipeline_mode = #tpu.pipeline_mode<synchronous>, transform_indices = @transform_8, window_bounds = array<i64: 64, 128>}, {pipeline_mode = #tpu.pipeline_mode<synchronous>, transform_indices = @transform_9, window_bounds = array<i64: 1, 128>}, {transform_indices = @transform_10, window_bounds = array<i64: 16, 128>}, {transform_indices = @transform_11, window_bounds = array<i64: 16, 1>}]} {
    %c0 = arith.constant 0 : index
    %c0_0 = arith.constant 0 : index
    %0 = vector.load %arg1[%c0, %c0_0] : memref<16x32xbf16, #tpu.memory_space<vmem>>, vector<16x32xbf16>
    %c0_1 = arith.constant 0 : index
    %c0_2 = arith.constant 0 : index
    %1 = vector.load %arg4[%c0_1, %c0_2] : memref<32x64xbf16, #tpu.memory_space<vmem>>, vector<32x64xbf16>
    %cst = arith.constant dense<0.000000e+00> : vector<16x64xf32>
    %2 = tpu.matmul %0, %1, %cst {dimension_numbers = #tpu.dot_dimension_numbers<[1], [0], [0], [1], [0, 0, 1, 1], [], []>} : vector<16x32xbf16>, vector<32x64xbf16>, vector<16x64xf32> -> vector<16x64xf32>
    %c0_3 = arith.constant 0 : index
    %c0_4 = arith.constant 0 : index
    %3 = vector.load %arg13[%c0_3, %c0_4] : memref<16x64xf32, #tpu.memory_space<vmem>>, vector<16x64xf32>
    tpu.vector_store %arg13[%c0_3, %c0_4], %2 {strides = array<i32>} : memref<16x64xf32, #tpu.memory_space<vmem>>, vector<16x64xf32>,
    %c0_5 = arith.constant 0 : index
    %c0_6 = arith.constant 0 : index
    %4 = vector.load %arg13[%c0_5, %c0_6] : memref<16x64xf32, #tpu.memory_space<vmem>>, vector<16x64xf32>
    %c0_7 = arith.constant 0 : index
    %c0_8 = arith.constant 0 : index
    %5 = vector.load %arg2[%c0_7, %c0_8] : memref<16x32xbf16, #tpu.memory_space<vmem>>, vector<16x32xbf16>
    %c0_9 = arith.constant 0 : index
    %c0_10 = arith.constant 0 : index
    %6 = vector.load %arg5[%c0_9, %c0_10] : memref<32x64xbf16, #tpu.memory_space<vmem>>, vector<32x64xbf16>
    %cst_11 = arith.constant dense<0.000000e+00> : vector<16x64xf32>
    %7 = tpu.matmul %5, %6, %cst_11 {dimension_numbers = #tpu.dot_dimension_numbers<[1], [0], [0], [1], [0, 0, 1, 1], [], []>} : vector<16x32xbf16>, vector<32x64xbf16>, vector<16x64xf32> -> vector<16x64xf32>
    %8 = arith.addf %4, %7 : vector<16x64xf32>
    %c0_12 = arith.constant 0 : index
    %c0_13 = arith.constant 0 : index
    %9 = vector.load %arg13[%c0_12, %c0_13] : memref<16x64xf32, #tpu.memory_space<vmem>>, vector<16x64xf32>
    tpu.vector_store %arg13[%c0_12, %c0_13], %8 {strides = array<i32>} : memref<16x64xf32, #tpu.memory_space<vmem>>, vector<16x64xf32>,
    %c0_14 = arith.constant 0 : index
    %c0_15 = arith.constant 0 : index
    %10 = vector.load %arg13[%c0_14, %c0_15] : memref<16x64xf32, #tpu.memory_space<vmem>>, vector<16x64xf32>
    %c0_16 = arith.constant 0 : index
    %c0_17 = arith.constant 0 : index
    %11 = vector.load %arg6[%c0_16, %c0_17] : memref<1x64xf32, #tpu.memory_space<vmem>>, vector<1x64xf32>
    %12 = vector.broadcast %11 : vector<1x64xf32> to vector<16x64xf32>
    %13 = arith.addf %10, %12 : vector<16x64xf32>
    %cst_18 = arith.constant dense<0.000000e+00> : vector<16xf32>
    %14 = vector.multi_reduction <add>, %13, %cst_18 [1] : vector<16x64xf32> to vector<16xf32>
    %15 = vector.shape_cast %14 : vector<16xf32> to vector<16x1xf32>
    %cst_19 = arith.constant 6.400000e+01 : f32
    %16 = vector.broadcast %cst_19 : f32 to vector<16x1xf32>
    %17 = arith.divf %15, %16 : vector<16x1xf32>
    %18 = arith.mulf %13, %13 : vector<16x64xf32>
    %cst_20 = arith.constant dense<0.000000e+00> : vector<16xf32>
    %19 = vector.multi_reduction <add>, %18, %cst_20 [1] : vector<16x64xf32> to vector<16xf32>
    %20 = vector.shape_cast %19 : vector<16xf32> to vector<16x1xf32>
    %cst_21 = arith.constant 6.400000e+01 : f32
    %21 = vector.broadcast %cst_21 : f32 to vector<16x1xf32>
    %22 = arith.divf %20, %21 : vector<16x1xf32>
    %23 = arith.mulf %17, %17 : vector<16x1xf32>
    %24 = arith.subf %22, %23 : vector<16x1xf32>
    %25 = vector.broadcast %17 : vector<16x1xf32> to vector<16x64xf32>
    %26 = arith.subf %13, %25 : vector<16x64xf32>
    %cst_22 = arith.constant 9.99999974E-6 : f32
    %27 = vector.broadcast %cst_22 : f32 to vector<16x1xf32>
    %28 = arith.addf %24, %27 : vector<16x1xf32>
    %29 = math.rsqrt %28 : vector<16x1xf32>
    %30 = vector.broadcast %29 : vector<16x1xf32> to vector<16x64xf32>
    %31 = arith.mulf %26, %30 : vector<16x64xf32>
    %c0_23 = arith.constant 0 : index
    %c0_24 = arith.constant 0 : index
    %32 = vector.load %arg7[%c0_23, %c0_24] : memref<1x64xf32, #tpu.memory_space<vmem>>, vector<1x64xf32>
    %33 = vector.broadcast %32 : vector<1x64xf32> to vector<16x64xf32>
    %34 = arith.mulf %31, %33 : vector<16x64xf32>
    %c0_25 = arith.constant 0 : index
    %c0_26 = arith.constant 0 : index
    %35 = vector.load %arg8[%c0_25, %c0_26] : memref<1x64xf32, #tpu.memory_space<vmem>>, vector<1x64xf32>
    %36 = vector.broadcast %35 : vector<1x64xf32> to vector<16x64xf32>
    %37 = arith.addf %34, %36 : vector<16x64xf32>
    %cst_27 = arith.constant 5.000000e-01 : f32
    %38 = vector.broadcast %cst_27 : f32 to vector<16x64xf32>
    %39 = arith.mulf %38, %37 : vector<16x64xf32>
    %cst_28 = arith.constant 0.707106769 : f32
    %40 = vector.broadcast %cst_28 : f32 to vector<16x64xf32>
    %41 = arith.mulf %37, %40 : vector<16x64xf32>
    %42 = math.erf %41 : vector<16x64xf32>
    %cst_29 = arith.constant 1.000000e+00 : f32
    %43 = vector.broadcast %cst_29 : f32 to vector<16x64xf32>
    %44 = arith.addf %43, %42 : vector<16x64xf32>
    %45 = arith.mulf %39, %44 : vector<16x64xf32>
    %46 = arith.truncf %45 : vector<16x64xf32> to vector<16x64xbf16>
    %c0_30 = arith.constant 0 : index
    %c0_31 = arith.constant 0 : index
    %47 = vector.load %arg9[%c0_30, %c0_31] : memref<64x128xbf16, #tpu.memory_space<vmem>>, vector<64x128xbf16>
    %cst_32 = arith.constant dense<0.000000e+00> : vector<16x128xf32>
    %48 = tpu.matmul %46, %47, %cst_32 {dimension_numbers = #tpu.dot_dimension_numbers<[1], [0], [0], [1], [0, 0, 1, 1], [], []>} : vector<16x64xbf16>, vector<64x128xbf16>, vector<16x128xf32> -> vector<16x128xf32>
    %c0_33 = arith.constant 0 : index
    %c0_34 = arith.constant 0 : index
    %49 = vector.load %arg10[%c0_33, %c0_34] : memref<1x128xf32, #tpu.memory_space<vmem>>, vector<1x128xf32>
    %50 = vector.broadcast %49 : vector<1x128xf32> to vector<16x128xf32>
    %51 = arith.addf %48, %50 : vector<16x128xf32>
    %c0_35 = arith.constant 0 : index
    %c0_36 = arith.constant 0 : index
    %52 = vector.load %arg11[%c0_35, %c0_36] : memref<16x128xf32, #tpu.memory_space<vmem>>, vector<16x128xf32>
    tpu.vector_store %arg11[%c0_35, %c0_36], %51 {strides = array<i32>} : memref<16x128xf32, #tpu.memory_space<vmem>>, vector<16x128xf32>,
    %cst_37 = arith.constant dense<0xFF800000> : vector<16xf32>
    %53 = vector.multi_reduction <maximumf>, %51, %cst_37 [1] : vector<16x128xf32> to vector<16xf32>
    %54 = vector.shape_cast %53 : vector<16xf32> to vector<16x1xf32>
    %55 = vector.broadcast %54 : vector<16x1xf32> to vector<16x128xf32>
    %56 = arith.subf %51, %55 : vector<16x128xf32>
    %57 = math.exp %56 : vector<16x128xf32>
    %cst_38 = arith.constant dense<0.000000e+00> : vector<16xf32>
    %58 = vector.multi_reduction <add>, %57, %cst_38 [1] : vector<16x128xf32> to vector<16xf32>
    %59 = vector.shape_cast %58 : vector<16xf32> to vector<16x1xf32>
    %60 = math.log %59 : vector<16x1xf32>
    %61 = arith.addf %54, %60 : vector<16x1xf32>
    %c0_39 = arith.constant 0 : index
    %c0_40 = arith.constant 0 : index
    %62 = vector.load %arg3[%c0_39, %c0_40] : memref<16x1xi32, #tpu.memory_space<vmem>>, vector<16x1xi32>
    %63 = tpu.iota {dimensions = array<i32: 1>} : vector<16x128xi32>
    %64 = vector.broadcast %62 : vector<16x1xi32> to vector<16x128xi32>
    %65 = arith.cmpi eq, %63, %64 : vector<16x128xi32>
    %cst_41 = arith.constant 0.000000e+00 : f32
    %66 = vector.broadcast %cst_41 : f32 to vector<16x128xf32>
    %67 = arith.select %65, %51, %66 : vector<16x128xi1>, vector<16x128xf32>
    %cst_42 = arith.constant dense<0.000000e+00> : vector<16xf32>
    %68 = vector.multi_reduction <add>, %67, %cst_42 [1] : vector<16x128xf32> to vector<16xf32>
    %69 = vector.shape_cast %68 : vector<16xf32> to vector<16x1xf32>
    %70 = arith.subf %61, %69 : vector<16x1xf32>
    %c0_43 = arith.constant 0 : index
    %c0_44 = arith.constant 0 : index
    %71 = vector.load %arg12[%c0_43, %c0_44] : memref<16x1xf32, #tpu.memory_space<vmem>>, vector<16x1xf32>
    tpu.vector_store %arg12[%c0_43, %c0_44], %70 {strides = array<i32>} : memref<16x1xf32, #tpu.memory_space<vmem>>, vector<16x1xf32>,
    return
  }
  func.func @transform_0(%arg0: i32) -> (i32, i32) {
    %c0_i32 = arith.constant 0 : i32
    %c0_i32_0 = arith.constant 0 : i32
    return %arg0, %c0_i32 : i32, i32
  }
  func.func @transform_1(%arg0: i32) -> (i32, i32) {
    %c0_i32 = arith.constant 0 : i32
    %c0_i32_0 = arith.constant 0 : i32
    return %arg0, %c0_i32 : i32, i32
  }
  func.func @transform_2(%arg0: i32) -> (i32, i32) {
    %c0_i32 = arith.constant 0 : i32
    %c0_i32_0 = arith.constant 0 : i32
    return %arg0, %c0_i32 : i32, i32
  }
  func.func @transform_3(%arg0: i32) -> (i32, i32) {
    %c0_i32 = arith.constant 0 : i32
    %c0_i32_0 = arith.constant 0 : i32
    %c0_i32_1 = arith.constant 0 : i32
    return %c0_i32, %c0_i32_0 : i32, i32
  }
  func.func @transform_4(%arg0: i32) -> (i32, i32) {
    %c0_i32 = arith.constant 0 : i32
    %c0_i32_0 = arith.constant 0 : i32
    %c0_i32_1 = arith.constant 0 : i32
    return %c0_i32, %c0_i32_0 : i32, i32
  }
  func.func @transform_5(%arg0: i32) -> (i32, i32) {
    %c0_i32 = arith.constant 0 : i32
    %c0_i32_0 = arith.constant 0 : i32
    %c0_i32_1 = arith.constant 0 : i32
    return %c0_i32, %c0_i32_0 : i32, i32
  }
  func.func @transform_6(%arg0: i32) -> (i32, i32) {
    %c0_i32 = arith.constant 0 : i32
    %c0_i32_0 = arith.constant 0 : i32
    %c0_i32_1 = arith.constant 0 : i32
    return %c0_i32, %c0_i32_0 : i32, i32
  }
  func.func @transform_7(%arg0: i32) -> (i32, i32) {
    %c0_i32 = arith.constant 0 : i32
    %c0_i32_0 = arith.constant 0 : i32
    %c0_i32_1 = arith.constant 0 : i32
    return %c0_i32, %c0_i32_0 : i32, i32
  }
  func.func @transform_8(%arg0: i32) -> (i32, i32) {
    %c0_i32 = arith.constant 0 : i32
    %c0_i32_0 = arith.constant 0 : i32
    %c0_i32_1 = arith.constant 0 : i32
    return %c0_i32, %c0_i32_0 : i32, i32
  }
  func.func @transform_9(%arg0: i32) -> (i32, i32) {
    %c0_i32 = arith.constant 0 : i32
    %c0_i32_0 = arith.constant 0 : i32
    %c0_i32_1 = arith.constant 0 : i32
    return %c0_i32, %c0_i32_0 : i32, i32
  }
  func.func @transform_10(%arg0: i32) -> (i32, i32) {
    %c0_i32 = arith.constant 0 : i32
    %c0_i32_0 = arith.constant 0 : i32
    return %arg0, %c0_i32 : i32, i32
  }
  func.func @transform_11(%arg0: i32) -> (i32, i32) {
    %c0_i32 = arith.constant 0 : i32
    %c0_i32_0 = arith.constant 0 : i32
    return %arg0, %c0_i32 : i32, i32
  }
}

</mosaic_0001>

<llo_original>
// kernel: nlvr2_head.1
$region0: #{nlvr2_head.1}
  #allocation0 [shape = 'u32[]', space=smem, size = 0x4, offset = 0x4, fixed_abs, tag = 'smem constant byte address 0x4 - core index']
  #allocation1 [shape = 'u32[144,128]{1,0:T(1,128)}', space=vmem, size = 0x12000, scoped, tag = 'internal scratch']
  #allocation2 [shape = 'f32[16,64]{1,0:T(8,128)}', space=vmem, size = 0x2000, scoped, tag = 'scratch operand']
  %s0 = inlined_call_operand.vmem [shape: bf16[16,32], index: 0, kind: input, shape index: {}]
  %s1 = inlined_call_operand.vmem [shape: bf16[16,32], index: 1, kind: input, shape index: {}]
  %s2 = inlined_call_operand.vmem [shape: s32[16,1], index: 2, kind: input, shape index: {}]
  %s3 = inlined_call_operand.vmem [shape: bf16[32,64], index: 3, kind: input, shape index: {}]
  %s4 = inlined_call_operand.vmem [shape: bf16[32,64], index: 4, kind: input, shape index: {}]
  %s5 = inlined_call_operand.vmem [shape: f32[1,64], index: 5, kind: input, shape index: {}]
  %s6 = inlined_call_operand.vmem [shape: f32[1,64], index: 6, kind: input, shape index: {}]
  %s7 = inlined_call_operand.vmem [shape: f32[1,64], index: 7, kind: input, shape index: {}]
  %s8 = inlined_call_operand.vmem [shape: bf16[64,128], index: 8, kind: input, shape index: {}]
  %s9 = inlined_call_operand.vmem [shape: f32[1,128], index: 9, kind: input, shape index: {}]
  %s10 = inlined_call_operand.vmem [shape: f32[16,128], index: 10, kind: output, shape index: {0}]
  %s11 = inlined_call_operand.vmem [shape: f32[16,1], index: 11, kind: output, shape index: {1}]
  %12 = xla_tuple %s10, %s11
  %s13 = sld [smem:[#allocation0]]
  $region58: #{nlvr2_head.1} parent=0
    _
  %s15 = ssub.s32 1, %s13
  %s16 = scalar_select 0, %s15, %s13
  // Predicated region
  $region2: #{nlvr2_head.1} parent=0 // pred_check
    _
  $region3: #{nlvr2_head.1} parent=0 // pred_check_branch
    %18 = sbr.rel (0) target = $region5
  $region4: #{nlvr2_head.1} parent=0 // pred_region
    _
  $region5: #{nlvr2_head.1} parent=0 // pred_fallthru
    _
  // Predicated region
  $region6: #{nlvr2_head.1} parent=0 // pred_check
    _
  $region7: #{nlvr2_head.1} parent=0 // pred_check_branch
    %20 = sbr.rel (0) target = $region9
  $region8: #{nlvr2_head.1} parent=0 // pred_region
    _
  $region9: #{nlvr2_head.1} parent=0 // pred_fallthru
    _
  // Predicated region
  $region10: #{nlvr2_head.1} parent=0 // pred_check
    _
  $region11: #{nlvr2_head.1} parent=0 // pred_check_branch
    %22 = sbr.rel (0) target = $region13
  $region12: #{nlvr2_head.1} parent=0 // pred_region
    _
  $region13: #{nlvr2_head.1} parent=0 // pred_fallthru
    _
  // Predicated region
  $region14: #{nlvr2_head.1} parent=0 // pred_check
    _
  $region15: #{nlvr2_head.1} parent=0 // pred_check_branch
    %24 = sbr.rel (0) target = $region17
  $region16: #{nlvr2_head.1} parent=0 // pred_region
    _
  $region17: #{nlvr2_head.1} parent=0 // pred_fallthru
    _
  // Predicated region
  $region18: #{nlvr2_head.1} parent=0 // pred_check
    _
  $region19: #{nlvr2_head.1} parent=0 // pred_check_branch
    %26 = sbr.rel (0) target = $region21
  $region20: #{nlvr2_head.1} parent=0 // pred_region
    _
  $region21: #{nlvr2_head.1} parent=0 // pred_fallthru
    _
  // Predicated region
  $region22: #{nlvr2_head.1} parent=0 // pred_check
    _
  $region23: #{nlvr2_head.1} parent=0 // pred_check_branch
    %28 = sbr.rel (0) target = $region25
  $region24: #{nlvr2_head.1} parent=0 // pred_region
    _
  $region25: #{nlvr2_head.1} parent=0 // pred_fallthru
    _
  // Predicated region
  $region26: #{nlvr2_head.1} parent=0 // pred_check
    _
  $region27: #{nlvr2_head.1} parent=0 // pred_check_branch
    %30 = sbr.rel (0) target = $region29
  $region28: #{nlvr2_head.1} parent=0 // pred_region
    _
  $region29: #{nlvr2_head.1} parent=0 // pred_fallthru
    _
  // Predicated region
  $region30: #{nlvr2_head.1} parent=0 // pred_check
    _
  $region31: #{nlvr2_head.1} parent=0 // pred_check_branch
    %32 = sbr.rel (0) target = $region33
  $region32: #{nlvr2_head.1} parent=0 // pred_region
    _
  $region33: #{nlvr2_head.1} parent=0 // pred_fallthru
    _
  // Predicated region
  $region34: #{nlvr2_head.1} parent=0 // pred_check
    _
  $region35: #{nlvr2_head.1} parent=0 // pred_check_branch
    %34 = sbr.rel (0) target = $region37
  $region36: #{nlvr2_head.1} parent=0 // pred_region
    _
  $region37: #{nlvr2_head.1} parent=0 // pred_fallthru
    _
  // Predicated region
  $region38: #{nlvr2_head.1} parent=0 // pred_check
    _
  $region39: #{nlvr2_head.1} parent=0 // pred_check_branch
    %36 = sbr.rel (0) target = $region41
  $region40: #{nlvr2_head.1} parent=0 // pred_region
    _
  $region41: #{nlvr2_head.1} parent=0 // pred_fallthru
    _
  %v38 = vld [vmem:[%s0] sm:$0xf]
  %v39 = vld [vmem:[%s0 + $0x4] sm:$0xf]
  %v40 = vld [vmem:[%s3] sm:$0xf]
  %v41 = vld [vmem:[%s3 + $0x4] sm:$0xf]
  %v42 = vld [vmem:[%s3 + $0x8] sm:$0xf]
  %v43 = vld [vmem:[%s3 + $0xc] sm:$0xf]
  %v46 = vunpack.c.l.b16 %v38
  %v47 = vunpack.c.l.b16 %v39
  %v48 = vpack.c.b16 %v47, %v46
  %v53 = vunpack.c.l.b16 %v40
  %v54 = vunpack.c.l.b16 %v41
  %v55 = vunpack.c.l.b16 %v42
  %v56 = vunpack.c.l.b16 %v43
  %v57 = vpack.c.b16 %v54, %v53
  %v58 = vpack.c.b16 %v56, %v55
  %vm61 = vcmask 261120
  %v63 = vsel %vm61, %v48, 0
  %65 = vmatprep.subr.bf16.mxu0 0
  %66 = vmatpush1.bf16.msra.mxu0 %v57
  %67 = vmatprep.subr.bf16.mxu0 0
  %68 = vmatpush1.bf16.msra.mxu0 %v58
  %69 = vmatprep.subr.bf16.mxu0 0
  %70 = vmatpush1.bf16.msra.mxu0 0
  %71 = vmatprep.subr.bf16.mxu0 0
  %72 = vmatpush1.bf16.msra.mxu0 0
  %73 = vmatprep.subr.bf16.mxu0 0
  %74 = vmatpush1.bf16.msra.mxu0 0
  %75 = vmatprep.subr.bf16.mxu0 0
  %76 = vmatpush1.bf16.msra.mxu0 0
  %77 = vmatprep.subr.bf16.mxu0 0
  %78 = vmatpush1.bf16.msra.mxu0 0
  %79 = vmatprep.subr.bf16.mxu0 0
  %80 = vmatpush1.bf16.msra.mxu0 0
  %81 = vmatprep.subr.bf16.mxu0 0
  %82 = vmatpush1.bf16.msra.mxu0 0
  %83 = vmatprep.subr.bf16.mxu0 0
  %84 = vmatpush1.bf16.msra.mxu0 0
  %85 = vmatprep.subr.bf16.mxu0 0
  %86 = vmatpush1.bf16.msra.mxu0 0
  %87 = vmatprep.subr.bf16.mxu0 0
  %88 = vmatpush1.bf16.msra.mxu0 0
  %89 = vmatprep.subr.bf16.mxu0 0
  %90 = vmatpush1.bf16.msra.mxu0 0
  %91 = vmatprep.subr.bf16.mxu0 0
  %92 = vmatpush1.bf16.msra.mxu0 0
  %93 = vmatprep.subr.bf16.mxu0 0
  %94 = vmatpush1.bf16.msra.mxu0 0
  %95 = vmatprep.subr.bf16.mxu0 0
  %96 = vmatpush1.bf16.msra.mxu0 0
  %97 = vmatprep.mubr.bf16.mxu0 0
  %98 = vmatmul.mubr.bf16.gmra.mrb[0].mxu0 %v63
  %v99 = vpop.f32.mrb[0].mxu0
  %v100 = vadd.f32 0.0, %v99
  %v101 = vpop.f32.mrb[0].mxu0
  %v102 = vpop.f32.mrb[0].mxu0
  %v103 = vadd.f32 0.0, %v102
  %v104 = vpop.f32.mrb[0].mxu0
  %105 = vdwg.mxu0
  %vm106 = vcmask 523264
  %107 = vst.msk [vmem:[#allocation2] sm:$0xff] %vm106, %v100
  %108 = vst.msk [vmem:[#allocation2 + $0x8] sm:$0xff] %vm106, %v103
  %v109 = vld [vmem:[#allocation2] sm:$0xff]
  %v110 = vld [vmem:[#allocation2 + $0x8] sm:$0xff]
  %v111 = vld [vmem:[%s1] sm:$0xf]
  %v112 = vld [vmem:[%s1 + $0x4] sm:$0xf]
  %v113 = vld [vmem:[%s4] sm:$0xf]
  %v114 = vld [vmem:[%s4 + $0x4] sm:$0xf]
  %v115 = vld [vmem:[%s4 + $0x8] sm:$0xf]
  %v116 = vld [vmem:[%s4 + $0xc] sm:$0xf]
  %v119 = vunpack.c.l.b16 %v111
  %v120 = vunpack.c.l.b16 %v112
  %v121 = vpack.c.b16 %v120, %v119
  %v126 = vunpack.c.l.b16 %v113
  %v127 = vunpack.c.l.b16 %v114
  %v128 = vunpack.c.l.b16 %v115
  %v129 = vunpack.c.l.b16 %v116
  %v130 = vpack.c.b16 %v127, %v126
  %v131 = vpack.c.b16 %v129, %v128
  %v135 = vsel %vm61, %v121, 0
  %137 = vmatprep.subr.bf16.mxu0 0
  %138 = vmatpush1.bf16.msra.mxu0 %v130
  %139 = vmatprep.subr.bf16.mxu0 0
  %140 = vmatpush1.bf16.msra.mxu0 %v131
  %141 = vmatprep.subr.bf16.mxu0 0
  %142 = vmatpush1.bf16.msra.mxu0 0
  %143 = vmatprep.subr.bf16.mxu0 0
  %144 = vmatpush1.bf16.msra.mxu0 0
  %145 = vmatprep.subr.bf16.mxu0 0
  %146 = vmatpush1.bf16.msra.mxu0 0
  %147 = vmatprep.subr.bf16.mxu0 0
  %148 = vmatpush1.bf16.msra.mxu0 0
  %149 = vmatprep.subr.bf16.mxu0 0
  %150 = vmatpush1.bf16.msra.mxu0 0
  %151 = vmatprep.subr.bf16.mxu0 0
  %152 = vmatpush1.bf16.msra.mxu0 0
  %153 = vmatprep.subr.bf16.mxu0 0
  %154 = vmatpush1.bf16.msra.mxu0 0
  %155 = vmatprep.subr.bf16.mxu0 0
  %156 = vmatpush1.bf16.msra.mxu0 0
  %157 = vmatprep.subr.bf16.mxu0 0
  %158 = vmatpush1.bf16.msra.mxu0 0
  %159 = vmatprep.subr.bf16.mxu0 0
  %160 = vmatpush1.bf16.msra.mxu0 0
  %161 = vmatprep.subr.bf16.mxu0 0
  %162 = vmatpush1.bf16.msra.mxu0 0
  %163 = vmatprep.subr.bf16.mxu0 0
  %164 = vmatpush1.bf16.msra.mxu0 0
  %165 = vmatprep.subr.bf16.mxu0 0
  %166 = vmatpush1.bf16.msra.mxu0 0
  %167 = vmatprep.subr.bf16.mxu0 0
  %168 = vmatpush1.bf16.msra.mxu0 0
  %169 = vmatprep.mubr.bf16.mxu0 0
  %170 = vmatmul.mubr.bf16.gmra.mrb[0].mxu0 %v135
  %v171 = vpop.f32.mrb[0].mxu0
  %v172 = vadd.f32 0.0, %v171
  %v173 = vpop.f32.mrb[0].mxu0
  %v174 = vpop.f32.mrb[0].mxu0
  %v175 = vadd.f32 0.0, %v174
  %v176 = vpop.f32.mrb[0].mxu0
  %177 = vdwg.mxu0
  %v178 = vadd.f32 %v109, %v172
  %v179 = vadd.f32 %v110, %v175
  %180 = vst.msk [vmem:[#allocation2] sm:$0xff] %vm106, %v178
  %181 = vst.msk [vmem:[#allocation2 + $0x8] sm:$0xff] %vm106, %v179
  %v182 = vld [vmem:[#allocation2] sm:$0xff]
  %v183 = vld [vmem:[#allocation2 + $0x8] sm:$0xff]
  %v184 = vld [vmem:[%s5] sm:$0x1]
  %v186 = vlaneseq
  %v187 = vshrl.u32 %v186, 7
  %v188 = vsub.s32 0, %v187
  %v189 = vrot.slane %v184, %v188
  %v191 = vadd.f32 %v182, %v189
  %v192 = vadd.f32 %v183, %v189
  %v193 = vsel %vm106, %v191, 0.0
  %194 = vadd.xlane.f32.xlu0 %v193
  %v195 = vpop.xlane.xlu0 %194
  %v196 = vsel %vm106, %v192, 0.0
  %197 = vadd.xlane.f32.xlu0 %v196
  %v198 = vpop.xlane.xlu0 %197
  %v199 = vrcp.pop 64.0
  %v200 = vmul.f32 %v195, %v199
  %v201 = vmul.f32 %v198, %v199
  %v202 = vmul.f32 %v191, %v191
  %v203 = vmul.f32 %v192, %v192
  %v204 = vsel %vm106, %v202, 0.0
  %205 = vadd.xlane.f32.xlu0 %v204
  %v206 = vpop.xlane.xlu0 %205
  %v207 = vsel %vm106, %v203, 0.0
  %208 = vadd.xlane.f32.xlu0 %v207
  %v209 = vpop.xlane.xlu0 %208
  %v210 = vmul.f32 %v206, %v199
  %v211 = vmul.f32 %v209, %v199
  %v212 = vmul.f32 %v200, %v200
  %v213 = vmul.f32 %v201, %v201
  %v214 = vsub.f32 %v210, %v212
  %v215 = vsub.f32 %v211, %v213
  %v216 = vsub.f32 %v191, %v200
  %v217 = vsub.f32 %v192, %v201
  %v218 = vadd.f32 %v214, 1e-05
  %v219 = vadd.f32 %v215, 1e-05
  %v220 = vrsqrt.pop %v218
  %v221 = vrsqrt.pop %v219
  %v222 = vmul.f32 %v216, %v220
  %v223 = vmul.f32 %v217, %v221
  %v224 = vld [vmem:[%s6] sm:$0x1]
  %v226 = vlaneseq
  %v227 = vshrl.u32 %v226, 7
  %v228 = vsub.s32 0, %v227
  %v229 = vrot.slane %v224, %v228
  %v231 = vmul.f32 %v222, %v229
  %v232 = vmul.f32 %v223, %v229
  %v233 = vld [vmem:[%s7] sm:$0x1]
  %v235 = vlaneseq
  %v236 = vshrl.u32 %v235, 7
  %v237 = vsub.s32 0, %v236
  %v238 = vrot.slane %v233, %v237
  %v240 = vadd.f32 %v231, %v238
  %v241 = vadd.f32 %v232, %v238
  %v242 = vmul.f32 %v240, 0.5
  %v243 = vmul.f32 %v241, 0.5
  %v244 = vmul.f32 %v240, 0.70710677
  %v245 = vmul.f32 %v241, 0.70710677
  %v246 = verf.f32.pop %v244
  %v247 = verf.f32.pop %v245
  %v248 = vadd.f32 %v246, 1.0
  %v249 = vadd.f32 %v247, 1.0
  %v250 = vmul.f32 %v242, %v248
  %v251 = vmul.f32 %v243, %v249
  %v252 = vpack.c.bf16 %v251, %v250
  %v253 = vld [vmem:[%s8] sm:$0xf]
  %v254 = vld [vmem:[%s8 + $0x4] sm:$0xf]
  %v255 = vld [vmem:[%s8 + $0x8] sm:$0xf]
  %v256 = vld [vmem:[%s8 + $0xc] sm:$0xf]
  %v257 = vld [vmem:[%s8 + $0x10] sm:$0xf]
  %v258 = vld [vmem:[%s8 + $0x14] sm:$0xf]
  %v259 = vld [vmem:[%s8 + $0x18] sm:$0xf]
  %v260 = vld [vmem:[%s8 + $0x1c] sm:$0xf]
  %v261 = vld [vmem:[%s9] sm:$0x1]
  %v263 = vlaneseq
  %v264 = vshrl.u32 %v263, 7
  %v265 = vsub.s32 0, %v264
  %v266 = vrot.slane %v261, %v265
  %v276 = vunpack.c.l.b16 %v253
  %v277 = vunpack.c.l.b16 %v254
  %v278 = vunpack.c.l.b16 %v255
  %v279 = vunpack.c.l.b16 %v256
  %v280 = vunpack.c.l.b16 %v257
  %v281 = vunpack.c.l.b16 %v258
  %v282 = vunpack.c.l.b16 %v259
  %v283 = vunpack.c.l.b16 %v260
  %v284 = vpack.c.b16 %v277, %v276
  %v285 = vpack.c.b16 %v279, %v278
  %v286 = vpack.c.b16 %v281, %v280
  %v287 = vpack.c.b16 %v283, %v282
  %v293 = vsel %vm106, %v252, 0
  %295 = vmatprep.subr.bf16.mxu0 0
  %296 = vmatpush1.bf16.msra.mxu0 %v284
  %297 = vmatprep.subr.bf16.mxu0 0
  %298 = vmatpush1.bf16.msra.mxu0 %v285
  %299 = vmatprep.subr.bf16.mxu0 0
  %300 = vmatpush1.bf16.msra.mxu0 %v286
  %301 = vmatprep.subr.bf16.mxu0 0
  %302 = vmatpush1.bf16.msra.mxu0 %v287
  %303 = vmatprep.subr.bf16.mxu0 0
  %304 = vmatpush1.bf16.msra.mxu0 0
  %305 = vmatprep.subr.bf16.mxu0 0
  %306 = vmatpush1.bf16.msra.mxu0 0
  %307 = vmatprep.subr.bf16.mxu0 0
  %308 = vmatpush1.bf16.msra.mxu0 0
  %309 = vmatprep.subr.bf16.mxu0 0
  %310 = vmatpush1.bf16.msra.mxu0 0
  %311 = vmatprep.subr.bf16.mxu0 0
  %312 = vmatpush1.bf16.msra.mxu0 0
  %313 = vmatprep.subr.bf16.mxu0 0
  %314 = vmatpush1.bf16.msra.mxu0 0
  %315 = vmatprep.subr.bf16.mxu0 0
  %316 = vmatpush1.bf16.msra.mxu0 0
  %317 = vmatprep.subr.bf16.mxu0 0
  %318 = vmatpush1.bf16.msra.mxu0 0
  %319 = vmatprep.subr.bf16.mxu0 0
  %320 = vmatpush1.bf16.msra.mxu0 0
  %321 = vmatprep.subr.bf16.mxu0 0
  %322 = vmatpush1.bf16.msra.mxu0 0
  %323 = vmatprep.subr.bf16.mxu0 0
  %324 = vmatpush1.bf16.msra.mxu0 0
  %325 = vmatprep.subr.bf16.mxu0 0
  %326 = vmatpush1.bf16.msra.mxu0 0
  %327 = vmatprep.mubr.bf16.mxu0 0
  %328 = vmatmul.mubr.bf16.gmra.mrb[0].mxu0 %v293
  %v329 = vpop.f32.mrb[0].mxu0
  %v330 = vadd.f32 %v266, %v329
  %v331 = vpop.f32.mrb[0].mxu0
  %v332 = vpop.f32.mrb[0].mxu0
  %v333 = vadd.f32 %v266, %v332
  %v334 = vpop.f32.mrb[0].mxu0
  %335 = vdwg.mxu0
  %336 = vst [vmem:[%s10] sm:$0xff] %v330
  %337 = vst [vmem:[%s10 + $0x8] sm:$0xff] %v333
  %338 = vmax.xlane.f32.xlu0 %v330
  %v339 = vpop.xlane.xlu0 %338
  %340 = vmax.xlane.f32.xlu0 %v333
  %v341 = vpop.xlane.xlu0 %340
  %v342 = vsub.f32 %v330, %v339
  %v343 = vsub.f32 %v333, %v341
  %v344 = vmul.f32 %v342, 1.442695
  %v345 = vpow.pop %v344
  %v346 = vmul.f32 %v343, 1.442695
  %v347 = vpow.pop %v346
  %348 = vadd.xlane.f32.xlu0 %v345
  %v349 = vpop.xlane.xlu0 %348
  %350 = vadd.xlane.f32.xlu0 %v347
  %v351 = vpop.xlane.xlu0 %350
  %v352 = vlog2.pop %v349
  %v353 = vmul.f32 %v352, 0.6931472
  %v354 = vlog2.pop %v351
  %v355 = vmul.f32 %v354, 0.6931472
  %v356 = vadd.f32 %v339, %v353
  %v357 = vadd.f32 %v341, %v355
  %v358 = vld [vmem:[%s2] sm:$0xff]
  %v359 = vld [vmem:[%s2 + $0x8] sm:$0xff]
  %v360 = vlaneseq
  %v361 = vand.u32 %v360, 127
  %362 = vset.pattern.permute.xlu0 0
  %363 = vperm.xlu0 %362, %v358
  %v364 = vpop.permute.xlu0 %363
  %365 = vset.pattern.permute.xlu0 0
  %366 = vperm.xlu0 %365, %v359
  %v367 = vpop.permute.xlu0 %366
  %vm368 = vcmp.eq.s32.totalorder %v361, %v364
  %vm369 = vcmp.eq.s32.totalorder %v361, %v367
  %v370 = vsel %vm368, %v330, 0.0
  %v371 = vsel %vm369, %v333, 0.0
  %372 = vadd.xlane.f32.xlu0 %v370
  %v373 = vpop.xlane.xlu0 %372
  %374 = vadd.xlane.f32.xlu0 %v371
  %v375 = vpop.xlane.xlu0 %374
  %v376 = vsub.f32 %v356, %v373
  %v377 = vsub.f32 %v357, %v375
  %vm378 = vcmask 7168
  %379 = vst.msk [vmem:[%s11] sm:$0xff] %vm378, %v376
  %380 = vst.msk [vmem:[%s11 + $0x8] sm:$0xff] %vm378, %v377
  // Predicated region
  $region42: #{nlvr2_head.1} parent=0 // pred_check
    _
  $region43: #{nlvr2_head.1} parent=0 // pred_check_branch
    %382 = sbr.rel (0) target = $region45
  $region44: #{nlvr2_head.1} parent=0 // pred_region
    _
  $region45: #{nlvr2_head.1} parent=0 // pred_fallthru
    _
  // Predicated region
  $region46: #{nlvr2_head.1} parent=0 // pred_check
    _
  $region47: #{nlvr2_head.1} parent=0 // pred_check_branch
    %384 = sbr.rel (0) target = $region49
  $region48: #{nlvr2_head.1} parent=0 // pred_region
    _
  $region49: #{nlvr2_head.1} parent=0 // pred_fallthru
    _
  // Predicated region
  $region50: #{nlvr2_head.1} parent=0 // pred_check
    _
  $region51: #{nlvr2_head.1} parent=0 // pred_check_branch
    %386 = sbr.rel (0) target = $region53
  $region52: #{nlvr2_head.1} parent=0 // pred_region
    _
  $region53: #{nlvr2_head.1} parent=0 // pred_fallthru
    _
  // Predicated region
  $region54: #{nlvr2_head.1} parent=0 // pred_check
    _
  $region55: #{nlvr2_head.1} parent=0 // pred_check_branch
    %388 = sbr.rel (0) target = $region57
  $region56: #{nlvr2_head.1} parent=0 // pred_region
    _
  $region57: #{nlvr2_head.1} parent=0 // pred_fallthru
    _

</llo_original>
